<compile_context>
chip_gen: v5e
topology: v5e:2x2
jax: 0.10.0
libtpu: 0.0.40
codegen_flags: <defaults>
</compile_context>

<pallas_src>
import jax
import jax.numpy as jnp
from jax.experimental import pallas as pl
from jax.experimental.pallas import tpu as pltpu

# ---- "args" -----------------------------------------------------------------
LATDIM = 32
NUM_GCN_LAYERS = 2
D_IN = LATDIM * NUM_GCN_LAYERS ** 2   # 128
H1 = LATDIM * NUM_GCN_LAYERS          # 64
H2 = LATDIM                           # 32


def _round_up(x, m):
    return ((x + m - 1) // m) * m


def _choose_tm(p, kp1, n_nodes, cap=512):
    """VMEM-aware row-tile size.

    Per-tile f32 intermediates are ~ (kp1*tm)*(2N + 3*D_IN + H1 + H2)*4 B; keep
    them under ~24 MiB (inside the 32 MiB default scoped limit, well under
    v7x's 64 MiB physical VMEM).  Also prefer >= 2 row tiles so the
    ("parallel",) grid axis gives both v7x TensorCores work, and cap at 512
    rows (already ~HBM-roofline; less padded-row waste than 1024).
    """
    per_row = 4 * (2 * n_nodes + 3 * D_IN + H1 + H2 + 8)
    rows_budget = (24 * 1024 * 1024) // per_row
    cap = max(8, min(cap, (rows_budget // kp1) // 8 * 8))
    return max(8, min(cap, _round_up(max((p + 1) // 2, 8), 8)))


# ---- Pallas kernel ----------------------------------------------------------
def _build_kernel(kp1, tm, n_nodes):
    r = kp1 * tm   # rows per tile (pos plane + K negative planes) on the lane axis

    def kernel(nvalid_ref,                               # scalar prefetch (SMEM)
               idsa_ref, idsb_ref,                       # (1, 1, R) int32 index tiles
               atab_ref, btab_ref,                       # (D_IN, N) product tables (resident)
               w1t_ref, b1c_ref, w2t_ref, b2c_ref,       # transposed MLP params (resident)
               w3c_ref, b3_ref,
               out_ref):                                 # (1, 1, 1) partial loss
        i = pl.program_id(0)

        # ---- in-kernel gather: one-hot (N, R) from a broadcast int compare,
        #      then an exact f32 MXU matmul against the resident tables. -----
        node_iota = jax.lax.broadcasted_iota(jnp.int32, (n_nodes, r), 0)
        oh_a = (idsa_ref[0] == node_iota).astype(jnp.float32)          # (N, R)
        oh_b = (idsb_ref[0] == node_iota).astype(jnp.float32)
        xa = jnp.dot(atab_ref[...], oh_a, preferred_element_type=jnp.float32)
        xb = jnp.dot(btab_ref[...], oh_b, preferred_element_type=jnp.float32)
        x = xa * xb                                                    # (D_IN, R) pairwise product

        # ---- MLP in transposed orientation (features on sublanes). ---------
        h = jnp.dot(w1t_ref[...], x, preferred_element_type=jnp.float32) + b1c_ref[...]
        h = jnp.maximum(h, 0.0)                                        # (H1, R)
        h = jnp.dot(w2t_ref[...], h, preferred_element_type=jnp.float32) + b2c_ref[...]
        h = jnp.maximum(h, 0.0)                                        # (H2, R)
        # last Linear (H2 -> 1): VPU multiply + sublane reduction (no 1-wide MXU op)
        z = jnp.sum(h * w3c_ref[...], axis=0, keepdims=True) + b3_ref[...]   # (1, R)

        # numerically stable sigmoid, then exp (matches torch exp(sigmoid(.)))
        ez = jnp.exp(-jnp.abs(z))
        sig = jnp.where(z >= 0, 1.0 / (1.0 + ez), ez / (1.0 + ez))
        s = jnp.exp(sig)                                               # (1, R)

        # ---- per-positive segment sum over the K negative planes -----------
        pos_scr = s[:, 0:tm]                                           # (1, TM)
        neg_sum = s[:, tm:2 * tm]
        for q in range(2, kp1):
            neg_sum = neg_sum + s[:, q * tm:(q + 1) * tm]
        term = pos_scr / (neg_sum + pos_scr + 1e-8) + 1e-8             # (1, TM)

        # mask padded rows (global row id >= true P) so the +1e-8 bias matches
        # the PyTorch reference exactly.
        rowid = i * tm + jax.lax.broadcasted_iota(jnp.int32, (1, tm), 1)
        term = jnp.where(rowid < nvalid_ref[0], term, 0.0)

        out_ref[...] = jnp.broadcast_to(-jnp.sum(term), (1, 1, 1))

    return kernel


def decoder_loss_pallas(ids_a, ids_b, a_tab_t, b_tab_t, n_rows, params, kp1, tm):
    """ids_*: (G, 1, kp1*tm) int32 tile-major index planes; *_tab_t: (D_IN, N)."""
    w1, b1, w2, b2, w3, b3 = params
    g = ids_a.shape[0]
    r = kp1 * tm
    d_in, n_nodes = a_tab_t.shape

    # the two (D_IN, N) tables stay resident in VMEM; guard the assumption.
    assert 2 * d_in * n_nodes * 4 <= 8 * 1024 * 1024, (
        "node table too large for the resident-VMEM one-hot gather; "
        "see TODO(synk) at the top of this file")

    # transposed params so every layer is a straight (out, in) @ (in, R) matmul
    w1t = w1.T                    # (H1, D_IN)
    b1c = b1.reshape(H1, 1)
    w2t = w2.T                    # (H2, H1)
    b2c = b2.reshape(H2, 1)
    w3c = w3.reshape(H2, 1)
    b3c = b3.reshape(1, 1)

    rows = g * r
    n_param = int(w1.size + b1.size + w2.size + b2.size + w3.size + b3.size)
    cost = pl.CostEstimate(
        flops=int(rows * (4 * d_in * n_nodes            # one-hot gather matmuls
                          + d_in                         # pairwise product
                          + 2 * (d_in * H1 + H1 * H2 + H2))),
        transcendentals=int(2 * rows),
        bytes_accessed=int(2 * rows * 4                  # index tiles (streamed)
                           + 2 * d_in * n_nodes * 4      # tables (fetched once)
                           + n_param * 4                 # params (fetched once)
                           + g * 4 + 4),                 # per-tile loss out + nvalid
    )

    # explicit VMEM budget: per-tile intermediates + resident tables/params +
    # double-buffered index tiles; stays well under v7x's 64 MiB physical VMEM.
    live_vmem = (r * (2 * n_nodes + 3 * d_in + H1 + H2 + 4)
                 + 2 * d_in * n_nodes + n_param
                 + 2 * 2 * r) * 4
    vmem_limit = int(min(48 * 1024 * 1024, max(32 * 1024 * 1024, 2 * live_vmem)))

    out = pl.pallas_call(
        _build_kernel(kp1, tm, n_nodes),
        out_shape=jax.ShapeDtypeStruct((g, 1, 1), jnp.float32),
        grid_spec=pltpu.PrefetchScalarGridSpec(
            num_scalar_prefetch=1,
            grid=(g,),
            in_specs=[
                pl.BlockSpec((1, 1, r), lambda i, n: (i, 0, 0)),        # ids_a tile
                pl.BlockSpec((1, 1, r), lambda i, n: (i, 0, 0)),        # ids_b tile
                pl.BlockSpec((d_in, n_nodes), lambda i, n: (0, 0)),     # A table (resident)
                pl.BlockSpec((d_in, n_nodes), lambda i, n: (0, 0)),     # B table (resident)
                pl.BlockSpec((H1, D_IN), lambda i, n: (0, 0)),
                pl.BlockSpec((H1, 1), lambda i, n: (0, 0)),
                pl.BlockSpec((H2, H1), lambda i, n: (0, 0)),
                pl.BlockSpec((H2, 1), lambda i, n: (0, 0)),
                pl.BlockSpec((H2, 1), lambda i, n: (0, 0)),
                pl.BlockSpec((1, 1), lambda i, n: (0, 0)),
            ],
            out_specs=pl.BlockSpec((1, 1, 1), lambda i, n: (i, 0, 0)),
        ),
        compiler_params=pltpu.CompilerParams(
            dimension_semantics=("parallel",),
            vmem_limit_bytes=vmem_limit),
        cost_estimate=cost,
    )(jnp.array([n_rows], jnp.int32), ids_a, ids_b, a_tab_t, b_tab_t,
      w1t, b1c, w2t, b2c, w3c, b3c)

    return jnp.sum(out)


# ---- wrapper: build tiny index tables + product tables, call the kernel -----
def decoder_forward(embeds, pos, neg, params, tile_rows=512):
    # embeds: (L, N, latdim) f32 ; pos: (P, 2) i32 ; neg: (P, K, 2) i32
    L, n_nodes, latdim = embeds.shape
    P = pos.shape[0]
    K = neg.shape[1]
    kp1 = K + 1
    d_in = L * L * latdim
    assert d_in == D_IN and latdim == LATDIM and L == NUM_GCN_LAYERS

    # Pairwise-product tables: row u of A = concat_{(i,j)} embeds[i][u] and
    # row v of B = concat_{(i,j)} embeds[j][v], so A[u] * B[v] reproduces the
    # reference's concat of embeds[i][u] * embeds[j][v] segments exactly.
    a_tab = jnp.concatenate([embeds[i] for i in range(L) for _ in range(L)], axis=-1)
    b_tab = jnp.concatenate([embeds[j] for _ in range(L) for j in range(L)], axis=-1)

    tm = min(_round_up(tile_rows, 8), _choose_tm(P, kp1, n_nodes))
    ppad = _round_up(P, tm)
    g = ppad // tm

    # index planes: plane 0 = positive pair, planes 1..K = k-th negative pair
    idx_a = jnp.concatenate([pos[:, 0][None, :], neg[:, :, 0].T], axis=0)   # (K+1, P)
    idx_b = jnp.concatenate([pos[:, 1][None, :], neg[:, :, 1].T], axis=0)
    if ppad != P:
        # padded rows gather node 0 (valid) and are masked out in the kernel
        idx_a = jnp.pad(idx_a, ((0, 0), (0, ppad - P)))
        idx_b = jnp.pad(idx_b, ((0, 0), (0, ppad - P)))

    def tileize(idx):
        # (K+1, Ppad) -> (G, 1, (K+1)*tm), tile-major so each grid step loads a
        # single dense lane-major row of indices (no in-kernel relayout needed).
        return (idx.reshape(kp1, g, tm).transpose(1, 0, 2)
                   .reshape(g, 1, kp1 * tm).astype(jnp.int32))

    return decoder_loss_pallas(tileize(idx_a), tileize(idx_b),
                               a_tab.T, b_tab.T, P, params, kp1, tm)


# ---- pure-JAX reference (mirrors the PyTorch forward) ------------------------
def decoder_forward_ref(embeds, pos, neg, params):
    w1, b1, w2, b2, w3, b3 = params
    L = embeds.shape[0]
    pos_pieces, neg_pieces = [], []
    for i in range(L):
        for j in range(L):
            pos_pieces.append(embeds[i][pos[:, 0]] * embeds[j][pos[:, 1]])
            neg_pieces.append(embeds[i][neg[:, :, 0]] * embeds[j][neg[:, :, 1]])
    pos_emb = jnp.concatenate(pos_pieces, -1)
    neg_emb = jnp.concatenate(neg_pieces, -1)

    def mlp(x):
        h = jnp.maximum(x @ w1 + b1[0], 0.0)
        h = jnp.maximum(h @ w2 + b2[0], 0.0)
        return jax.nn.sigmoid(h @ w3 + b3[0])

    pos_scr = jnp.exp(jnp.squeeze(mlp(pos_emb)))               # (P,)
    neg_scr = jnp.exp(jnp.squeeze(mlp(neg_emb)))               # (P, K)
    neg_scr = jnp.sum(neg_scr, -1) + pos_scr                   # (P,)
    return -jnp.sum(pos_scr / (neg_scr + 1e-8) + 1e-8)


# ---- deterministic parameter init (xavier_uniform weights, zero bias) --------
def xavier_uniform(key, fan_in, fan_out):
    bound = (6.0 / (fan_in + fan_out)) ** 0.5
    # stored as (in, out): equivalent to transposed torch (out, in) weight
    return jax.random.uniform(key, (fan_in, fan_out), jnp.float32, -bound, bound)


if __name__ == "__main__":
    key = jax.random.PRNGKey(0)
    k_e, k_p, k_n, k_w1, k_w2, k_w3 = jax.random.split(key, 6)

    # small shapes: 2 GCN layers, 16 nodes, 24 positive pairs, 4 negatives each
    L, N_NODES, P, K = NUM_GCN_LAYERS, 16, 24, 4
    embeds = jax.random.normal(k_e, (L, N_NODES, LATDIM), jnp.float32)
    pos = jax.random.randint(k_p, (P, 2), 0, N_NODES, jnp.int32)
    neg = jax.random.randint(k_n, (P, K, 2), 0, N_NODES, jnp.int32)

    params = (
        xavier_uniform(k_w1, D_IN, H1), jnp.zeros((1, H1), jnp.float32),
        xavier_uniform(k_w2, H1, H2),   jnp.zeros((1, H2), jnp.float32),
        xavier_uniform(k_w3, H2, 1),    jnp.zeros((1, 1), jnp.float32),
    )

    loss = jax.block_until_ready(decoder_forward(embeds, pos, neg, params))
    loss_ref = jax.block_until_ready(decoder_forward_ref(embeds, pos, neg, params))

    assert jnp.allclose(loss, loss_ref, rtol=1e-4, atol=1e-5), (loss, loss_ref)
    print("KERNEL_OK")
</pallas_src>

<mosaic_0001>
module attributes {stable_mosaic.version = 11 : i64} {
  func.func @kernel(%arg0: i32, %arg1: memref<1xi32, #tpu.memory_space<smem>>, %arg2: memref<1x1x80xi32, #tpu.memory_space<vmem>>, %arg3: memref<1x1x80xi32, #tpu.memory_space<vmem>>, %arg4: memref<128x16xf32, #tpu.memory_space<vmem>>, %arg5: memref<128x16xf32, #tpu.memory_space<vmem>>, %arg6: memref<64x128xf32, #tpu.memory_space<vmem>>, %arg7: memref<64x1xf32, #tpu.memory_space<vmem>>, %arg8: memref<32x64xf32, #tpu.memory_space<vmem>>, %arg9: memref<32x1xf32, #tpu.memory_space<vmem>>, %arg10: memref<32x1xf32, #tpu.memory_space<vmem>>, %arg11: memref<1x1xf32, #tpu.memory_space<vmem>>, %arg12: memref<1x1x1xf32, #tpu.memory_space<vmem>>) attributes {dimension_semantics = [#tpu.dimension_semantics<parallel>], iteration_bounds = array<i64: 2>, scalar_prefetch = 1 : i64, scratch_operands = 0 : i64, tpu.core_type = #tpu.core_type<tc>, window_params = [{transform_indices = @transform_0, window_bounds = array<i64: 1, 1, 80>}, {transform_indices = @transform_1, window_bounds = array<i64: 1, 1, 80>}, {pipeline_mode = #tpu.pipeline_mode<synchronous>, transform_indices = @transform_2, window_bounds = array<i64: 128, 16>}, {pipeline_mode = #tpu.pipeline_mode<synchronous>, transform_indices = @transform_3, window_bounds = array<i64: 128, 16>}, {pipeline_mode = #tpu.pipeline_mode<synchronous>, transform_indices = @transform_4, window_bounds = array<i64: 64, 128>}, {pipeline_mode = #tpu.pipeline_mode<synchronous>, transform_indices = @transform_5, window_bounds = array<i64: 64, 1>}, {pipeline_mode = #tpu.pipeline_mode<synchronous>, transform_indices = @transform_6, window_bounds = array<i64: 32, 64>}, {pipeline_mode = #tpu.pipeline_mode<synchronous>, transform_indices = @transform_7, window_bounds = array<i64: 32, 1>}, {pipeline_mode = #tpu.pipeline_mode<synchronous>, transform_indices = @transform_8, window_bounds = array<i64: 32, 1>}, {pipeline_mode = #tpu.pipeline_mode<synchronous>, transform_indices = @transform_9, window_bounds = array<i64: 1, 1>}, {transform_indices = @transform_10, window_bounds = array<i64: 1, 1, 1>}]} {
    %0 = tpu.iota {dimensions = array<i32: 0>} : vector<16x80xi32>
    %c0 = arith.constant 0 : index
    %c0_0 = arith.constant 0 : index
    %c0_1 = arith.constant 0 : index
    %1 = vector.load %arg2[%c0, %c0_0, %c0_1] : memref<1x1x80xi32, #tpu.memory_space<vmem>>, vector<1x1x80xi32>
    %2 = vector.shape_cast %1 : vector<1x1x80xi32> to vector<1x80xi32>
    %3 = vector.broadcast %2 : vector<1x80xi32> to vector<16x80xi32>
    %4 = arith.cmpi eq, %3, %0 : vector<16x80xi32>
    %5 = arith.extui %4 : vector<16x80xi1> to vector<16x80xi32>
    %6 = arith.sitofp %5 : vector<16x80xi32> to vector<16x80xf32>
    %c0_2 = arith.constant 0 : index
    %c0_3 = arith.constant 0 : index
    %c0_4 = arith.constant 0 : index
    %7 = vector.load %arg3[%c0_2, %c0_3, %c0_4] : memref<1x1x80xi32, #tpu.memory_space<vmem>>, vector<1x1x80xi32>
    %8 = vector.shape_cast %7 : vector<1x1x80xi32> to vector<1x80xi32>
    %9 = vector.broadcast %8 : vector<1x80xi32> to vector<16x80xi32>
    %10 = arith.cmpi eq, %9, %0 : vector<16x80xi32>
    %11 = arith.extui %10 : vector<16x80xi1> to vector<16x80xi32>
    %12 = arith.sitofp %11 : vector<16x80xi32> to vector<16x80xf32>
    %c0_5 = arith.constant 0 : index
    %c0_6 = arith.constant 0 : index
    %13 = vector.load %arg4[%c0_5, %c0_6] : memref<128x16xf32, #tpu.memory_space<vmem>>, vector<128x16xf32>
    %cst = arith.constant dense<0.000000e+00> : vector<128x80xf32>
    %14 = tpu.matmul %13, %6, %cst {dimension_numbers = #tpu.dot_dimension_numbers<[1], [0], [0], [1], [0, 0, 1, 1], [], []>} : vector<128x16xf32>, vector<16x80xf32>, vector<128x80xf32> -> vector<128x80xf32>
    %c0_7 = arith.constant 0 : index
    %c0_8 = arith.constant 0 : index
    %15 = vector.load %arg5[%c0_7, %c0_8] : memref<128x16xf32, #tpu.memory_space<vmem>>, vector<128x16xf32>
    %cst_9 = arith.constant dense<0.000000e+00> : vector<128x80xf32>
    %16 = tpu.matmul %15, %12, %cst_9 {dimension_numbers = #tpu.dot_dimension_numbers<[1], [0], [0], [1], [0, 0, 1, 1], [], []>} : vector<128x16xf32>, vector<16x80xf32>, vector<128x80xf32> -> vector<128x80xf32>
    %17 = arith.mulf %14, %16 : vector<128x80xf32>
    %c0_10 = arith.constant 0 : index
    %c0_11 = arith.constant 0 : index
    %18 = vector.load %arg6[%c0_10, %c0_11] : memref<64x128xf32, #tpu.memory_space<vmem>>, vector<64x128xf32>
    %cst_12 = arith.constant dense<0.000000e+00> : vector<64x80xf32>
    %19 = tpu.matmul %18, %17, %cst_12 {dimension_numbers = #tpu.dot_dimension_numbers<[1], [0], [0], [1], [0, 0, 1, 1], [], []>} : vector<64x128xf32>, vector<128x80xf32>, vector<64x80xf32> -> vector<64x80xf32>
    %c0_13 = arith.constant 0 : index
    %c0_14 = arith.constant 0 : index
    %20 = vector.load %arg7[%c0_13, %c0_14] : memref<64x1xf32, #tpu.memory_space<vmem>>, vector<64x1xf32>
    %21 = vector.broadcast %20 : vector<64x1xf32> to vector<64x80xf32>
    %22 = arith.addf %19, %21 : vector<64x80xf32>
    %cst_15 = arith.constant 0.000000e+00 : f32
    %23 = vector.broadcast %cst_15 : f32 to vector<64x80xf32>
    %24 = arith.maximumf %22, %23 : vector<64x80xf32>
    %c0_16 = arith.constant 0 : index
    %c0_17 = arith.constant 0 : index
    %25 = vector.load %arg8[%c0_16, %c0_17] : memref<32x64xf32, #tpu.memory_space<vmem>>, vector<32x64xf32>
    %cst_18 = arith.constant dense<0.000000e+00> : vector<32x80xf32>
    %26 = tpu.matmul %25, %24, %cst_18 {dimension_numbers = #tpu.dot_dimension_numbers<[1], [0], [0], [1], [0, 0, 1, 1], [], []>} : vector<32x64xf32>, vector<64x80xf32>, vector<32x80xf32> -> vector<32x80xf32>
    %c0_19 = arith.constant 0 : index
    %c0_20 = arith.constant 0 : index
    %27 = vector.load %arg9[%c0_19, %c0_20] : memref<32x1xf32, #tpu.memory_space<vmem>>, vector<32x1xf32>
    %28 = vector.broadcast %27 : vector<32x1xf32> to vector<32x80xf32>
    %29 = arith.addf %26, %28 : vector<32x80xf32>
    %cst_21 = arith.constant 0.000000e+00 : f32
    %30 = vector.broadcast %cst_21 : f32 to vector<32x80xf32>
    %31 = arith.maximumf %29, %30 : vector<32x80xf32>
    %c0_22 = arith.constant 0 : index
    %c0_23 = arith.constant 0 : index
    %32 = vector.load %arg10[%c0_22, %c0_23] : memref<32x1xf32, #tpu.memory_space<vmem>>, vector<32x1xf32>
    %33 = vector.broadcast %32 : vector<32x1xf32> to vector<32x80xf32>
    %34 = arith.mulf %31, %33 : vector<32x80xf32>
    %cst_24 = arith.constant dense<0.000000e+00> : vector<80xf32>
    %35 = vector.multi_reduction <add>, %34, %cst_24 [0] : vector<32x80xf32> to vector<80xf32>
    %36 = vector.shape_cast %35 : vector<80xf32> to vector<1x80xf32>
    %c0_25 = arith.constant 0 : index
    %c0_26 = arith.constant 0 : index
    %37 = vector.load %arg11[%c0_25, %c0_26] : memref<1x1xf32, #tpu.memory_space<vmem>>, vector<1x1xf32>
    %38 = vector.broadcast %37 : vector<1x1xf32> to vector<1x80xf32>
    %39 = arith.addf %36, %38 : vector<1x80xf32>
    %40 = math.absf %39 : vector<1x80xf32>
    %cst_27 = arith.constant 0.000000e+00 : f32
    %41 = vector.broadcast %cst_27 : f32 to vector<1x80xf32>
    %42 = arith.subf %41, %40 : vector<1x80xf32>
    %43 = math.exp %42 : vector<1x80xf32>
    %cst_28 = arith.constant 0.000000e+00 : f32
    %44 = vector.broadcast %cst_28 : f32 to vector<1x80xf32>
    %45 = arith.cmpf oge, %39, %44 : vector<1x80xf32>
    %cst_29 = arith.constant 1.000000e+00 : f32
    %46 = vector.broadcast %cst_29 : f32 to vector<1x80xf32>
    %47 = arith.addf %46, %43 : vector<1x80xf32>
    %cst_30 = arith.constant 1.000000e+00 : f32
    %48 = vector.broadcast %cst_30 : f32 to vector<1x80xf32>
    %49 = arith.divf %48, %47 : vector<1x80xf32>
    %cst_31 = arith.constant 1.000000e+00 : f32
    %50 = vector.broadcast %cst_31 : f32 to vector<1x80xf32>
    %51 = arith.addf %50, %43 : vector<1x80xf32>
    %52 = arith.divf %43, %51 : vector<1x80xf32>
    %53 = arith.select %45, %49, %52 : vector<1x80xi1>, vector<1x80xf32>
    %54 = math.exp %53 : vector<1x80xf32>
    %55 = vector.extract_strided_slice %54 {offsets = [0, 0], sizes = [1, 16], strides = [1, 1]} : vector<1x80xf32> to vector<1x16xf32>
    %56 = vector.extract_strided_slice %54 {offsets = [0, 16], sizes = [1, 16], strides = [1, 1]} : vector<1x80xf32> to vector<1x16xf32>
    %57 = vector.extract_strided_slice %54 {offsets = [0, 32], sizes = [1, 16], strides = [1, 1]} : vector<1x80xf32> to vector<1x16xf32>
    %58 = arith.addf %56, %57 : vector<1x16xf32>
    %59 = vector.extract_strided_slice %54 {offsets = [0, 48], sizes = [1, 16], strides = [1, 1]} : vector<1x80xf32> to vector<1x16xf32>
    %60 = arith.addf %58, %59 : vector<1x16xf32>
    %61 = vector.extract_strided_slice %54 {offsets = [0, 64], sizes = [1, 16], strides = [1, 1]} : vector<1x80xf32> to vector<1x16xf32>
    %62 = arith.addf %60, %61 : vector<1x16xf32>
    %63 = arith.addf %62, %55 : vector<1x16xf32>
    %cst_32 = arith.constant 9.99999993E-9 : f32
    %64 = vector.broadcast %cst_32 : f32 to vector<1x16xf32>
    %65 = arith.addf %63, %64 : vector<1x16xf32>
    %66 = arith.divf %55, %65 : vector<1x16xf32>
    %cst_33 = arith.constant 9.99999993E-9 : f32
    %67 = vector.broadcast %cst_33 : f32 to vector<1x16xf32>
    %68 = arith.addf %66, %67 : vector<1x16xf32>
    %c16_i32 = arith.constant 16 : i32
    %69 = arith.muli %arg0, %c16_i32 : i32
    %70 = tpu.iota {dimensions = array<i32: 1>} : vector<1x16xi32>
    %71 = vector.broadcast %69 : i32 to vector<1x16xi32>
    %72 = arith.addi %71, %70 : vector<1x16xi32>
    %c0_34 = arith.constant 0 : index
    %73 = memref.load %arg1[%c0_34] : memref<1xi32, #tpu.memory_space<smem>>
    %74 = vector.broadcast %73 : i32 to vector<1x16xi32>
    %75 = arith.cmpi slt, %72, %74 : vector<1x16xi32>
    %cst_35 = arith.constant 0.000000e+00 : f32
    %76 = vector.broadcast %cst_35 : f32 to vector<1x16xf32>
    %77 = arith.select %75, %68, %76 : vector<1x16xi1>, vector<1x16xf32>
    %78 = vector.shape_cast %77 : vector<1x16xf32> to vector<1x1x16xf32>
    %cst_36 = arith.constant dense<0.000000e+00> : vector<1xf32>
    %79 = vector.multi_reduction <add>, %78, %cst_36 [1, 2] : vector<1x1x16xf32> to vector<1xf32>
    %80 = vector.shape_cast %79 : vector<1xf32> to vector<1x1x1xf32>
    %81 = vector.extract %80[0, 0, 0] : f32 from vector<1x1x1xf32>
    %cst_37 = arith.constant 0.000000e+00 : f32
    %82 = arith.subf %cst_37, %81 : f32
    %83 = vector.broadcast %82 : f32 to vector<1x1x1xf32>
    %c0_38 = arith.constant 0 : index
    %c0_39 = arith.constant 0 : index
    %c0_40 = arith.constant 0 : index
    %84 = vector.load %arg12[%c0_38, %c0_39, %c0_40] : memref<1x1x1xf32, #tpu.memory_space<vmem>>, vector<1x1x1xf32>
    tpu.vector_store %arg12[%c0_38, %c0_39, %c0_40], %83 {strides = array<i32>} : memref<1x1x1xf32, #tpu.memory_space<vmem>>, vector<1x1x1xf32>,
    return
  }
  func.func @transform_0(%arg0: i32, %arg1: memref<1xi32, #tpu.memory_space<smem>>) -> (i32, i32, i32) {
    %c0_i32 = arith.constant 0 : i32
    %c0_i32_0 = arith.constant 0 : i32
    %c0_i32_1 = arith.constant 0 : i32
    return %arg0, %c0_i32, %c0_i32_0 : i32, i32, i32
  }
  func.func @transform_1(%arg0: i32, %arg1: memref<1xi32, #tpu.memory_space<smem>>) -> (i32, i32, i32) {
    %c0_i32 = arith.constant 0 : i32
    %c0_i32_0 = arith.constant 0 : i32
    %c0_i32_1 = arith.constant 0 : i32
    return %arg0, %c0_i32, %c0_i32_0 : i32, i32, i32
  }
  func.func @transform_2(%arg0: i32, %arg1: memref<1xi32, #tpu.memory_space<smem>>) -> (i32, i32) {
    %c0_i32 = arith.constant 0 : i32
    %c0_i32_0 = arith.constant 0 : i32
    %c0_i32_1 = arith.constant 0 : i32
    return %c0_i32, %c0_i32_0 : i32, i32
  }
  func.func @transform_3(%arg0: i32, %arg1: memref<1xi32, #tpu.memory_space<smem>>) -> (i32, i32) {
    %c0_i32 = arith.constant 0 : i32
    %c0_i32_0 = arith.constant 0 : i32
    %c0_i32_1 = arith.constant 0 : i32
    return %c0_i32, %c0_i32_0 : i32, i32
  }
  func.func @transform_4(%arg0: i32, %arg1: memref<1xi32, #tpu.memory_space<smem>>) -> (i32, i32) {
    %c0_i32 = arith.constant 0 : i32
    %c0_i32_0 = arith.constant 0 : i32
    %c0_i32_1 = arith.constant 0 : i32
    return %c0_i32, %c0_i32_0 : i32, i32
  }
  func.func @transform_5(%arg0: i32, %arg1: memref<1xi32, #tpu.memory_space<smem>>) -> (i32, i32) {
    %c0_i32 = arith.constant 0 : i32
    %c0_i32_0 = arith.constant 0 : i32
    %c0_i32_1 = arith.constant 0 : i32
    return %c0_i32, %c0_i32_0 : i32, i32
  }
  func.func @transform_6(%arg0: i32, %arg1: memref<1xi32, #tpu.memory_space<smem>>) -> (i32, i32) {
    %c0_i32 = arith.constant 0 : i32
    %c0_i32_0 = arith.constant 0 : i32
    %c0_i32_1 = arith.constant 0 : i32
    return %c0_i32, %c0_i32_0 : i32, i32
  }
  func.func @transform_7(%arg0: i32, %arg1: memref<1xi32, #tpu.memory_space<smem>>) -> (i32, i32) {
    %c0_i32 = arith.constant 0 : i32
    %c0_i32_0 = arith.constant 0 : i32
    %c0_i32_1 = arith.constant 0 : i32
    return %c0_i32, %c0_i32_0 : i32, i32
  }
  func.func @transform_8(%arg0: i32, %arg1: memref<1xi32, #tpu.memory_space<smem>>) -> (i32, i32) {
    %c0_i32 = arith.constant 0 : i32
    %c0_i32_0 = arith.constant 0 : i32
    %c0_i32_1 = arith.constant 0 : i32
    return %c0_i32, %c0_i32_0 : i32, i32
  }
  func.func @transform_9(%arg0: i32, %arg1: memref<1xi32, #tpu.memory_space<smem>>) -> (i32, i32) {
    %c0_i32 = arith.constant 0 : i32
    %c0_i32_0 = arith.constant 0 : i32
    %c0_i32_1 = arith.constant 0 : i32
    return %c0_i32, %c0_i32_0 : i32, i32
  }
  func.func @transform_10(%arg0: i32, %arg1: memref<1xi32, #tpu.memory_space<smem>>) -> (i32, i32, i32) {
    %c0_i32 = arith.constant 0 : i32
    %c0_i32_0 = arith.constant 0 : i32
    %c0_i32_1 = arith.constant 0 : i32
    return %arg0, %c0_i32, %c0_i32_0 : i32, i32, i32
  }
}

</mosaic_0001>

<llo_original>
// kernel: tpu_custom_call.1
$region0: #{tpu_custom_call.1}
  #allocation0 [shape = 'u32[]', space=smem, size = 0x4, offset = 0x4, fixed_abs, tag = 'smem constant byte address 0x4 - core index']
  #allocation1 [shape = 'u32[72,128]{1,0:T(1,128)}', space=vmem, size = 0x9000, scoped, tag = 'internal scratch']
  #allocation2 [shape = 's32[1]{0}', space=sflag, size = 0x4, scoped, tag = 'scoped memory for tpu_custom_call.1']
  #allocation3 [shape = 's32[1]{0:T(128)S(6)}', space=smem, size = 0x200, scoped, tag = 'prefetched SMEM operand 0']
  #allocation4 [shape = 'f32[1,1]{1,0:T(1,128)S(1)}', space=vmem, size = 0x200, scoped, tag = 'scoped memory for tpu_custom_call.1']
  %s0 = inlined_call_operand.<no memory space> [shape: s32[1], index: 0, kind: input, shape index: {}]
  %s1 = inlined_call_operand.vmem [shape: s32[2,1,80], index: 1, kind: input, shape index: {}]
  %s2 = inlined_call_operand.vmem [shape: s32[2,1,80], index: 2, kind: input, shape index: {}]
  %s3 = inlined_call_operand.vmem [shape: f32[128,16], index: 3, kind: input, shape index: {}]
  %s4 = inlined_call_operand.vmem [shape: f32[128,16], index: 4, kind: input, shape index: {}]
  %s5 = inlined_call_operand.vmem [shape: f32[64,128], index: 5, kind: input, shape index: {}]
  %s6 = inlined_call_operand.vmem [shape: f32[64,1], index: 6, kind: input, shape index: {}]
  %s7 = inlined_call_operand.vmem [shape: f32[32,64], index: 7, kind: input, shape index: {}]
  %s8 = inlined_call_operand.vmem [shape: f32[32,1], index: 8, kind: input, shape index: {}]
  %s9 = inlined_call_operand.vmem [shape: f32[32,1], index: 9, kind: input, shape index: {}]
  %s10 = inlined_call_operand.<no memory space> [shape: f32[1,1], index: 10, kind: input, shape index: {}]
  %s11 = inlined_call_operand.vmem [shape: f32[2,1,1], index: 11, kind: output, shape index: {}]
  %s12 = sld [smem:[#allocation0]]
  $region73: #{tpu_custom_call.1} parent=0
    _
  %s14 = ssub.s32 1, %s12
  %s15 = scalar_select 0, %s14, %s12
  %16 = sst [smem:[#allocation3]] %s0
  %v17 = vstv %s10
  %18 = vst [vmem:[#allocation4] sm:$0x1] %v17
  loop: start=0, step=1, limit=4
  $region2: #{tpu_custom_call.1} parent=0 // loop_pre_header
    _
  $region3: #{tpu_custom_call.1} parent=0 // loop_header
    %s20 = sphi 0, %s24
    %p21 = scmp.ge.s32.totalorder %s20, 4
    %s30 = sphi 0, %s32
    %s33 = sphi 0, %s30
    %s34 = sphi 0, %s33
    %s50 = sphi 0, %s34
    %s56 = sphi 0, %s58
    %s59 = sphi 0, %s56
    %s60 = sphi 0, %s59
    %s76 = sphi 0, %s60
    %s80 = sphi 0, %s80
    %s82 = sphi 0, %s80
    %s83 = sphi 0, %s82
    %s97 = sphi 0, %s83
    %s101 = sphi 0, %s101
    %s103 = sphi 0, %s101
    %s104 = sphi 0, %s103
    %s118 = sphi 0, %s104
    %s122 = sphi 0, %s122
    %s124 = sphi 0, %s122
    %s125 = sphi 0, %s124
    %s139 = sphi 0, %s125
    %s143 = sphi 0, %s143
    %s145 = sphi 0, %s143
    %s146 = sphi 0, %s145
    %s160 = sphi 0, %s146
    %s164 = sphi 0, %s164
    %s166 = sphi 0, %s164
    %s167 = sphi 0, %s166
    %s181 = sphi 0, %s167
    %s185 = sphi 0, %s185
    %s187 = sphi 0, %s185
    %s188 = sphi 0, %s187
    %s202 = sphi 0, %s188
    %s206 = sphi 0, %s206
    %s208 = sphi 0, %s206
    %s209 = sphi 0, %s208
    %s223 = sphi 0, %s209
    %s227 = sphi 0, %s227
    %s229 = sphi 0, %s227
    %s230 = sphi 0, %s229
    %s244 = sphi 0, %s230
    %s250 = sphi 0, %s252
    %s253 = sphi 0, %s250
    %s254 = sphi 0, %s253
    %s270 = sphi 0, %s254
  $region4: #{tpu_custom_call.1} parent=0 // loop_header_branch
    %23 = sbr.rel (%p21) target = $region8
  $region5: #{tpu_custom_call.1} parent=0 // loop_body
    %s25 = ssub.s32 %s20, 1
    %s26 = ssub.s32 %s20, 2
    %s27 = sadd.s32 %s20, 1
    %s28 = ssub.s32 %s20, %s27
    %p29 = scmp.eq.s32.totalorder %s28, 0
    %s31 = sadd.s32 %s30, 1
    %s32 = scalar_select %p29, %s30, %s31
    %p35 = pneg %p29
    %p36 = scmp.eq.s32.totalorder %s20, 1
    %p37 = por %p35, %p36
    %p38 = scmp.ne.s32.totalorder %s30, %s33
    %p39 = scmp.eq.s32.totalorder %s20, 0
    %p40 = por %p38, %p39
    %p41 = scmp.ne.s32.totalorder %s30, %s33
    %p42 = scmp.eq.s32.totalorder %s25, 1
    %p43 = por %p41, %p42
    %p44 = scmp.ne.s32.totalorder %s33, %s34
    %p45 = scmp.eq.s32.totalorder %s25, 0
    %p46 = por %p44, %p45
    %p47 = scmp.ne.s32.totalorder %s33, %s34
    %p48 = scmp.eq.s32.totalorder %s26, 1
    %p49 = por %p47, %p48
    %p51 = scmp.ne.s32.totalorder %s34, %s50
    %p52 = scmp.eq.s32.totalorder %s26, 0
    %p53 = por %p51, %p52
    %s54 = ssub.s32 %s20, %s27
    %p55 = scmp.eq.s32.totalorder %s54, 0
    %s57 = sadd.s32 %s56, 1
    %s58 = scalar_select %p55, %s56, %s57
    %p61 = pneg %p55
    %p62 = scmp.eq.s32.totalorder %s20, 1
    %p63 = por %p61, %p62
    %p64 = scmp.ne.s32.totalorder %s56, %s59
    %p65 = scmp.eq.s32.totalorder %s20, 0
    %p66 = por %p64, %p65
    %p67 = scmp.ne.s32.totalorder %s56, %s59
    %p68 = scmp.eq.s32.totalorder %s25, 1
    %p69 = por %p67, %p68
    %p70 = scmp.ne.s32.totalorder %s59, %s60
    %p71 = scmp.eq.s32.totalorder %s25, 0
    %p72 = por %p70, %p71
    %p73 = scmp.ne.s32.totalorder %s59, %s60
    %p74 = scmp.eq.s32.totalorder %s26, 1
    %p75 = por %p73, %p74
    %p77 = scmp.ne.s32.totalorder %s60, %s76
    %p78 = scmp.eq.s32.totalorder %s26, 0
    %p79 = por %p77, %p78
    %s81 = sadd.s32 %s80, 1
    %p84 = scmp.eq.s32.totalorder %s20, 1
    %p85 = scmp.ne.s32.totalorder %s80, %s82
    %p86 = scmp.eq.s32.totalorder %s20, 0
    %p87 = por %p85, %p86
    %p88 = scmp.ne.s32.totalorder %s80, %s82
    %p89 = scmp.eq.s32.totalorder %s25, 1
    %p90 = por %p88, %p89
    %p91 = scmp.ne.s32.totalorder %s82, %s83
    %p92 = scmp.eq.s32.totalorder %s25, 0
    %p93 = por %p91, %p92
    %p94 = scmp.ne.s32.totalorder %s82, %s83
    %p95 = scmp.eq.s32.totalorder %s26, 1
    %p96 = por %p94, %p95
    %p98 = scmp.ne.s32.totalorder %s83, %s97
    %p99 = scmp.eq.s32.totalorder %s26, 0
    %p100 = por %p98, %p99
    %s102 = sadd.s32 %s101, 1
    %p105 = scmp.eq.s32.totalorder %s20, 1
    %p106 = scmp.ne.s32.totalorder %s101, %s103
    %p107 = scmp.eq.s32.totalorder %s20, 0
    %p108 = por %p106, %p107
    %p109 = scmp.ne.s32.totalorder %s101, %s103
    %p110 = scmp.eq.s32.totalorder %s25, 1
    %p111 = por %p109, %p110
    %p112 = scmp.ne.s32.totalorder %s103, %s104
    %p113 = scmp.eq.s32.totalorder %s25, 0
    %p114 = por %p112, %p113
    %p115 = scmp.ne.s32.totalorder %s103, %s104
    %p116 = scmp.eq.s32.totalorder %s26, 1
    %p117 = por %p115, %p116
    %p119 = scmp.ne.s32.totalorder %s104, %s118
    %p120 = scmp.eq.s32.totalorder %s26, 0
    %p121 = por %p119, %p120
    %s123 = sadd.s32 %s122, 1
    %p126 = scmp.eq.s32.totalorder %s20, 1
    %p127 = scmp.ne.s32.totalorder %s122, %s124
    %p128 = scmp.eq.s32.totalorder %s20, 0
    %p129 = por %p127, %p128
    %p130 = scmp.ne.s32.totalorder %s122, %s124
    %p131 = scmp.eq.s32.totalorder %s25, 1
    %p132 = por %p130, %p131
    %p133 = scmp.ne.s32.totalorder %s124, %s125
    %p134 = scmp.eq.s32.totalorder %s25, 0
    %p135 = por %p133, %p134
    %p136 = scmp.ne.s32.totalorder %s124, %s125
    %p137 = scmp.eq.s32.totalorder %s26, 1
    %p138 = por %p136, %p137
    %p140 = scmp.ne.s32.totalorder %s125, %s139
    %p141 = scmp.eq.s32.totalorder %s26, 0
    %p142 = por %p140, %p141
    %s144 = sadd.s32 %s143, 1
    %p147 = scmp.eq.s32.totalorder %s20, 1
    %p148 = scmp.ne.s32.totalorder %s143, %s145
    %p149 = scmp.eq.s32.totalorder %s20, 0
    %p150 = por %p148, %p149
    %p151 = scmp.ne.s32.totalorder %s143, %s145
    %p152 = scmp.eq.s32.totalorder %s25, 1
    %p153 = por %p151, %p152
    %p154 = scmp.ne.s32.totalorder %s145, %s146
    %p155 = scmp.eq.s32.totalorder %s25, 0
    %p156 = por %p154, %p155
    %p157 = scmp.ne.s32.totalorder %s145, %s146
    %p158 = scmp.eq.s32.totalorder %s26, 1
    %p159 = por %p157, %p158
    %p161 = scmp.ne.s32.totalorder %s146, %s160
    %p162 = scmp.eq.s32.totalorder %s26, 0
    %p163 = por %p161, %p162
    %s165 = sadd.s32 %s164, 1
    %p168 = scmp.eq.s32.totalorder %s20, 1
    %p169 = scmp.ne.s32.totalorder %s164, %s166
    %p170 = scmp.eq.s32.totalorder %s20, 0
    %p171 = por %p169, %p170
    %p172 = scmp.ne.s32.totalorder %s164, %s166
    %p173 = scmp.eq.s32.totalorder %s25, 1
    %p174 = por %p172, %p173
    %p175 = scmp.ne.s32.totalorder %s166, %s167
    %p176 = scmp.eq.s32.totalorder %s25, 0
    %p177 = por %p175, %p176
    %p178 = scmp.ne.s32.totalorder %s166, %s167
    %p179 = scmp.eq.s32.totalorder %s26, 1
    %p180 = por %p178, %p179
    %p182 = scmp.ne.s32.totalorder %s167, %s181
    %p183 = scmp.eq.s32.totalorder %s26, 0
    %p184 = por %p182, %p183
    %s186 = sadd.s32 %s185, 1
    %p189 = scmp.eq.s32.totalorder %s20, 1
    %p190 = scmp.ne.s32.totalorder %s185, %s187
    %p191 = scmp.eq.s32.totalorder %s20, 0
    %p192 = por %p190, %p191
    %p193 = scmp.ne.s32.totalorder %s185, %s187
    %p194 = scmp.eq.s32.totalorder %s25, 1
    %p195 = por %p193, %p194
    %p196 = scmp.ne.s32.totalorder %s187, %s188
    %p197 = scmp.eq.s32.totalorder %s25, 0
    %p198 = por %p196, %p197
    %p199 = scmp.ne.s32.totalorder %s187, %s188
    %p200 = scmp.eq.s32.totalorder %s26, 1
    %p201 = por %p199, %p200
    %p203 = scmp.ne.s32.totalorder %s188, %s202
    %p204 = scmp.eq.s32.totalorder %s26, 0
    %p205 = por %p203, %p204
    %s207 = sadd.s32 %s206, 1
    %p210 = scmp.eq.s32.totalorder %s20, 1
    %p211 = scmp.ne.s32.totalorder %s206, %s208
    %p212 = scmp.eq.s32.totalorder %s20, 0
    %p213 = por %p211, %p212
    %p214 = scmp.ne.s32.totalorder %s206, %s208
    %p215 = scmp.eq.s32.totalorder %s25, 1
    %p216 = por %p214, %p215
    %p217 = scmp.ne.s32.totalorder %s208, %s209
    %p218 = scmp.eq.s32.totalorder %s25, 0
    %p219 = por %p217, %p218
    %p220 = scmp.ne.s32.totalorder %s208, %s209
    %p221 = scmp.eq.s32.totalorder %s26, 1
    %p222 = por %p220, %p221
    %p224 = scmp.ne.s32.totalorder %s209, %s223
    %p225 = scmp.eq.s32.totalorder %s26, 0
    %p226 = por %p224, %p225
    %s228 = sadd.s32 %s227, 1
    %p231 = scmp.eq.s32.totalorder %s20, 1
    %p232 = scmp.ne.s32.totalorder %s227, %s229
    %p233 = scmp.eq.s32.totalorder %s20, 0
    %p234 = por %p232, %p233
    %p235 = scmp.ne.s32.totalorder %s227, %s229
    %p236 = scmp.eq.s32.totalorder %s25, 1
    %p237 = por %p235, %p236
    %p238 = scmp.ne.s32.totalorder %s229, %s230
    %p239 = scmp.eq.s32.totalorder %s25, 0
    %p240 = por %p238, %p239
    %p241 = scmp.ne.s32.totalorder %s229, %s230
    %p242 = scmp.eq.s32.totalorder %s26, 1
    %p243 = por %p241, %p242
    %p245 = scmp.ne.s32.totalorder %s230, %s244
    %p246 = scmp.eq.s32.totalorder %s26, 0
    %p247 = por %p245, %p246
    %s248 = ssub.s32 %s20, %s27
    %p249 = scmp.eq.s32.totalorder %s248, 0
    %s251 = sadd.s32 %s250, 1
    %s252 = scalar_select %p249, %s250, %s251
    %p255 = pneg %p249
    %p256 = scmp.eq.s32.totalorder %s20, 1
    %p257 = por %p255, %p256
    %p258 = scmp.ne.s32.totalorder %s250, %s253
    %p259 = scmp.eq.s32.totalorder %s20, 0
    %p260 = por %p258, %p259
    %p261 = scmp.ne.s32.totalorder %s250, %s253
    %p262 = scmp.eq.s32.totalorder %s25, 1
    %p263 = por %p261, %p262
    %p264 = scmp.ne.s32.totalorder %s253, %s254
    %p265 = scmp.eq.s32.totalorder %s25, 0
    %p266 = por %p264, %p265
    %p267 = scmp.ne.s32.totalorder %s253, %s254
    %p268 = scmp.eq.s32.totalorder %s26, 1
    %p269 = por %p267, %p268
    %p271 = scmp.ne.s32.totalorder %s254, %s270
    %p272 = scmp.eq.s32.totalorder %s26, 0
    %p273 = por %p271, %p272
    %p274 = scmp.le.s32.totalorder 1, %s20
    %p275 = scmp.lt.s32.totalorder %s20, 3
    %p276 = pnand %p274, %p275
    %p277 = pneg %p276
    // Predicated region
    $region9: #{tpu_custom_call.1} parent=5 // pred_check
      _
    $region10: #{tpu_custom_call.1} parent=5 // pred_check_branch
      %279 = sbr.rel (%p276) target = $region12
    $region11: #{tpu_custom_call.1} parent=5 // pred_region
      %s280 = ssub.s32 %s20, 1
      // Predicated region
      $region13: #{tpu_custom_call.1} parent=11 // pred_check
        %p281 = pneg %p93
      $region14: #{tpu_custom_call.1} parent=11 // pred_check_branch
        %283 = sbr.rel (%p281) target = $region16
      $region15: #{tpu_custom_call.1} parent=11 // pred_region
        _
      $region16: #{tpu_custom_call.1} parent=11 // pred_fallthru
        _
      // Predicated region
      $region17: #{tpu_custom_call.1} parent=11 // pred_check
        %p284 = pneg %p114
      $region18: #{tpu_custom_call.1} parent=11 // pred_check_branch
        %286 = sbr.rel (%p284) target = $region20
      $region19: #{tpu_custom_call.1} parent=11 // pred_region
        _
      $region20: #{tpu_custom_call.1} parent=11 // pred_fallthru
        _
      // Predicated region
      $region21: #{tpu_custom_call.1} parent=11 // pred_check
        %p287 = pneg %p135
      $region22: #{tpu_custom_call.1} parent=11 // pred_check_branch
        %289 = sbr.rel (%p287) target = $region24
      $region23: #{tpu_custom_call.1} parent=11 // pred_region
        _
      $region24: #{tpu_custom_call.1} parent=11 // pred_fallthru
        _
      // Predicated region
      $region25: #{tpu_custom_call.1} parent=11 // pred_check
        %p290 = pneg %p156
      $region26: #{tpu_custom_call.1} parent=11 // pred_check_branch
        %292 = sbr.rel (%p290) target = $region28
      $region27: #{tpu_custom_call.1} parent=11 // pred_region
        _
      $region28: #{tpu_custom_call.1} parent=11 // pred_fallthru
        _
      // Predicated region
      $region29: #{tpu_custom_call.1} parent=11 // pred_check
        %p293 = pneg %p177
      $region30: #{tpu_custom_call.1} parent=11 // pred_check_branch
        %295 = sbr.rel (%p293) target = $region32
      $region31: #{tpu_custom_call.1} parent=11 // pred_region
        _
      $region32: #{tpu_custom_call.1} parent=11 // pred_fallthru
        _
      // Predicated region
      $region33: #{tpu_custom_call.1} parent=11 // pred_check
        %p296 = pneg %p198
      $region34: #{tpu_custom_call.1} parent=11 // pred_check_branch
        %298 = sbr.rel (%p296) target = $region36
      $region35: #{tpu_custom_call.1} parent=11 // pred_region
        _
      $region36: #{tpu_custom_call.1} parent=11 // pred_fallthru
        _
      // Predicated region
      $region37: #{tpu_custom_call.1} parent=11 // pred_check
        %p299 = pneg %p219
      $region38: #{tpu_custom_call.1} parent=11 // pred_check_branch
        %301 = sbr.rel (%p299) target = $region40
      $region39: #{tpu_custom_call.1} parent=11 // pred_region
        _
      $region40: #{tpu_custom_call.1} parent=11 // pred_fallthru
        _
      // Predicated region
      $region41: #{tpu_custom_call.1} parent=11 // pred_check
        %p302 = pneg %p240
      $region42: #{tpu_custom_call.1} parent=11 // pred_check_branch
        %304 = sbr.rel (%p302) target = $region44
      $region43: #{tpu_custom_call.1} parent=11 // pred_region
        _
      $region44: #{tpu_custom_call.1} parent=11 // pred_fallthru
        _
    $region12: #{tpu_custom_call.1} parent=5 // pred_fallthru
      _
    %p305 = scmp.lt.s32.totalorder %s20, 2
    // Predicated region
    $region45: #{tpu_custom_call.1} parent=5 // pred_check
      %p306 = pneg %p305
    $region46: #{tpu_custom_call.1} parent=5 // pred_check_branch
      %308 = sbr.rel (%p306) target = $region48
    $region47: #{tpu_custom_call.1} parent=5 // pred_region
      // Predicated region
      $region49: #{tpu_custom_call.1} parent=47 // pred_check
        %p309 = pneg %p40
      $region50: #{tpu_custom_call.1} parent=47 // pred_check_branch
        %311 = sbr.rel (%p309) target = $region52
      $region51: #{tpu_custom_call.1} parent=47 // pred_region
        %p312 = scmp.lt.s32.totalorder %s20, 1
        %s313 = scalar_select %p312, %s20, 1
        %s314 = scalar_lea.vmem %s1, %s313
      $region52: #{tpu_custom_call.1} parent=47 // pred_fallthru
        _
      // Predicated region
      $region53: #{tpu_custom_call.1} parent=47 // pred_check
        %p315 = pneg %p66
      $region54: #{tpu_custom_call.1} parent=47 // pred_check_branch
        %317 = sbr.rel (%p315) target = $region56
      $region55: #{tpu_custom_call.1} parent=47 // pred_region
        %p318 = scmp.lt.s32.totalorder %s20, 1
        %s319 = scalar_select %p318, %s20, 1
        %s320 = scalar_lea.vmem %s2, %s319
      $region56: #{tpu_custom_call.1} parent=47 // pred_fallthru
        _
    $region48: #{tpu_custom_call.1} parent=5 // pred_fallthru
      _
    %p321 = scmp.le.s32.totalorder 1, %s20
    %p322 = scmp.lt.s32.totalorder %s20, 3
    %p323 = pnand %p321, %p322
    %p324 = pneg %p323
    // Predicated region
    $region57: #{tpu_custom_call.1} parent=5 // pred_check
      _
    $region58: #{tpu_custom_call.1} parent=5 // pred_check_branch
      %326 = sbr.rel (%p323) target = $region60
    $region59: #{tpu_custom_call.1} parent=5 // pred_region
      %s327 = ssub.s32 %s20, 1
      %p328 = scmp.lt.s32.totalorder %s25, 1
      %s329 = scalar_select %p328, %s25, 1
      %s330 = scalar_lea.vmem %s1, %s329
      %p331 = pneg %p46
      %p332 = pneg %p43
      %p333 = scmp.lt.s32.totalorder %s25, 1
      %s334 = scalar_select %p333, %s25, 1
      %s335 = scalar_lea.vmem %s2, %s334
      %p336 = pneg %p72
      %p337 = pneg %p69
      %p338 = pneg %p93
      %p339 = pneg %p90
      %p340 = pneg %p114
      %p341 = pneg %p111
      %p342 = pneg %p135
      %p343 = pneg %p132
      %p344 = pneg %p156
      %p345 = pneg %p153
      %p346 = pneg %p177
      %p347 = pneg %p174
      %p348 = pneg %p198
      %p349 = pneg %p195
      %p350 = pneg %p219
      %p351 = pneg %p216
      %p352 = pneg %p240
      %p353 = pneg %p237
      %p354 = pneg %p266
      %p355 = pneg %p263
      %p356 = scmp.lt.s32.totalorder %s25, 1
      %s357 = scalar_select %p356, %s25, 1
      %s358 = scalar_lea.vmem %s11, %s357
      %p359 = scmp.lt.s32.totalorder %s25, 1
      %s360 = scalar_select %p359, %s25, 1
      %s361 = scalar_lea.vmem %s1, %s360
      %p362 = scmp.lt.s32.totalorder %s25, 1
      %s363 = scalar_select %p362, %s25, 1
      %s364 = scalar_lea.vmem %s2, %s363
      %p365 = scmp.lt.s32.totalorder %s25, 1
      %s366 = scalar_select %p365, %s25, 1
      %s367 = scalar_lea.vmem %s11, %s366
      %v368 = vlaneseq
      %v369 = vshrl.u32 %v368, 7
      %v370 = vadd.s32 %v369, 8
      %v371 = vld [vmem:[%s361] sm:$0x1]
      %v372 = vperm.slane %v371, 0
      %vm373 = vcmp.eq.s32.totalorder %v372, %v369
      %vm374 = vcmp.eq.s32.totalorder %v372, %v370
      %v375 = vsel %vm373, 1, 0
      %v376 = vsel %vm374, 1, 0
      %v377 = vcvt.s32.f32 %v375
      %v378 = vcvt.s32.f32 %v376
      %v379 = vld [vmem:[%s364] sm:$0x1]
      %v380 = vperm.slane %v379, 0
      %vm381 = vcmp.eq.s32.totalorder %v380, %v369
      %vm382 = vcmp.eq.s32.totalorder %v380, %v370
      %v383 = vsel %vm381, 1, 0
      %v384 = vsel %vm382, 1, 0
      %v385 = vcvt.s32.f32 %v383
      %v386 = vcvt.s32.f32 %v384
      %v387 = vld [vmem:[%s3] sm:$0xff]
      %v388 = vld [vmem:[%s3 + $0x8] sm:$0xff]
      %v389 = vld [vmem:[%s3 + $0x10] sm:$0xff]
      %v390 = vld [vmem:[%s3 + $0x18] sm:$0xff]
      %v391 = vld [vmem:[%s3 + $0x20] sm:$0xff]
      %v392 = vld [vmem:[%s3 + $0x28] sm:$0xff]
      %v393 = vld [vmem:[%s3 + $0x30] sm:$0xff]
      %v394 = vld [vmem:[%s3 + $0x38] sm:$0xff]
      %v395 = vld [vmem:[%s3 + $0x40] sm:$0xff]
      %v396 = vld [vmem:[%s3 + $0x48] sm:$0xff]
      %v397 = vld [vmem:[%s3 + $0x50] sm:$0xff]
      %v398 = vld [vmem:[%s3 + $0x58] sm:$0xff]
      %v399 = vld [vmem:[%s3 + $0x60] sm:$0xff]
      %v400 = vld [vmem:[%s3 + $0x68] sm:$0xff]
      %v401 = vld [vmem:[%s3 + $0x70] sm:$0xff]
      %v402 = vld [vmem:[%s3 + $0x78] sm:$0xff]
      %vm403 = vcmask 130048
      %v405 = vsel %vm403, %v387, 0
      %v408 = vsel %vm403, %v388, 0
      %v411 = vsel %vm403, %v389, 0
      %v414 = vsel %vm403, %v390, 0
      %v417 = vsel %vm403, %v391, 0
      %v420 = vsel %vm403, %v392, 0
      %v423 = vsel %vm403, %v393, 0
      %v426 = vsel %vm403, %v394, 0
      %v429 = vsel %vm403, %v395, 0
      %v432 = vsel %vm403, %v396, 0
      %v435 = vsel %vm403, %v397, 0
      %v438 = vsel %vm403, %v398, 0
      %v441 = vsel %vm403, %v399, 0
      %v444 = vsel %vm403, %v400, 0
      %v447 = vsel %vm403, %v401, 0
      %v450 = vsel %vm403, %v402, 0
      %452 = vmatpush.msra.mxu0 0.0
      %453 = vmatpush.msra.mxu0 0.0
      %454 = vmatpush.msra.mxu0 0.0
      %455 = vmatpush.msra.mxu0 0.0
      %456 = vmatpush.msra.mxu0 0.0
      %457 = vmatpush.msra.mxu0 0.0
      %458 = vmatpush.msra.mxu0 0.0
      %459 = vmatpush.msra.mxu0 0.0
      %460 = vmatpush.msra.mxu0 0.0
      %461 = vmatpush.msra.mxu0 0.0
      %462 = vmatpush.msra.mxu0 0.0
      %463 = vmatpush.msra.mxu0 0.0
      %464 = vmatpush.msra.mxu0 0.0
      %465 = vmatpush.msra.mxu0 0.0
      %466 = vmatpush.msra.mxu0 %v378
      %467 = vmatpush.msra.mxu0 %v377
      %468 = vmatmul.f32.gmra.mxu0 %v405
      %v469 = vpop.f32.mrf.mxu0
      %v470 = vadd.f32 0.0, %v469
      %471 = vmatmul.f32.gmra.mxu0 %v408
      %v472 = vpop.f32.mrf.mxu0
      %v473 = vadd.f32 0.0, %v472
      %474 = vmatmul.f32.gmra.mxu0 %v411
      %v475 = vpop.f32.mrf.mxu0
      %v476 = vadd.f32 0.0, %v475
      %477 = vmatmul.f32.gmra.mxu0 %v414
      %v478 = vpop.f32.mrf.mxu0
      %v479 = vadd.f32 0.0, %v478
      %480 = vmatmul.f32.gmra.mxu0 %v417
      %v481 = vpop.f32.mrf.mxu0
      %v482 = vadd.f32 0.0, %v481
      %483 = vmatmul.f32.gmra.mxu0 %v420
      %v484 = vpop.f32.mrf.mxu0
      %v485 = vadd.f32 0.0, %v484
      %486 = vmatmul.f32.gmra.mxu0 %v423
      %v487 = vpop.f32.mrf.mxu0
      %v488 = vadd.f32 0.0, %v487
      %489 = vmatmul.f32.gmra.mxu0 %v426
      %v490 = vpop.f32.mrf.mxu0
      %v491 = vadd.f32 0.0, %v490
      %492 = vmatmul.f32.gmra.mxu0 %v429
      %v493 = vpop.f32.mrf.mxu0
      %v494 = vadd.f32 0.0, %v493
      %495 = vmatmul.f32.gmra.mxu0 %v432
      %v496 = vpop.f32.mrf.mxu0
      %v497 = vadd.f32 0.0, %v496
      %498 = vmatmul.f32.gmra.mxu0 %v435
      %v499 = vpop.f32.mrf.mxu0
      %v500 = vadd.f32 0.0, %v499
      %501 = vmatmul.f32.gmra.mxu0 %v438
      %v502 = vpop.f32.mrf.mxu0
      %v503 = vadd.f32 0.0, %v502
      %504 = vmatmul.f32.gmra.mxu0 %v441
      %v505 = vpop.f32.mrf.mxu0
      %v506 = vadd.f32 0.0, %v505
      %507 = vmatmul.f32.gmra.mxu0 %v444
      %v508 = vpop.f32.mrf.mxu0
      %v509 = vadd.f32 0.0, %v508
      %510 = vmatmul.f32.gmra.mxu0 %v447
      %v511 = vpop.f32.mrf.mxu0
      %v512 = vadd.f32 0.0, %v511
      %513 = vmatmul.f32.gmra.mxu0 %v450
      %v514 = vpop.f32.mrf.mxu0
      %v515 = vadd.f32 0.0, %v514
      %516 = vdwg.mxu0
      %v517 = vld [vmem:[%s4] sm:$0xff]
      %v518 = vld [vmem:[%s4 + $0x8] sm:$0xff]
      %v519 = vld [vmem:[%s4 + $0x10] sm:$0xff]
      %v520 = vld [vmem:[%s4 + $0x18] sm:$0xff]
      %v521 = vld [vmem:[%s4 + $0x20] sm:$0xff]
      %v522 = vld [vmem:[%s4 + $0x28] sm:$0xff]
      %v523 = vld [vmem:[%s4 + $0x30] sm:$0xff]
      %v524 = vld [vmem:[%s4 + $0x38] sm:$0xff]
      %v525 = vld [vmem:[%s4 + $0x40] sm:$0xff]
      %v526 = vld [vmem:[%s4 + $0x48] sm:$0xff]
      %v527 = vld [vmem:[%s4 + $0x50] sm:$0xff]
      %v528 = vld [vmem:[%s4 + $0x58] sm:$0xff]
      %v529 = vld [vmem:[%s4 + $0x60] sm:$0xff]
      %v530 = vld [vmem:[%s4 + $0x68] sm:$0xff]
      %v531 = vld [vmem:[%s4 + $0x70] sm:$0xff]
      %v532 = vld [vmem:[%s4 + $0x78] sm:$0xff]
      %v534 = vsel %vm403, %v517, 0
      %v537 = vsel %vm403, %v518, 0
      %v540 = vsel %vm403, %v519, 0
      %v543 = vsel %vm403, %v520, 0
      %v546 = vsel %vm403, %v521, 0
      %v549 = vsel %vm403, %v522, 0
      %v552 = vsel %vm403, %v523, 0
      %v555 = vsel %vm403, %v524, 0
      %v558 = vsel %vm403, %v525, 0
      %v561 = vsel %vm403, %v526, 0
      %v564 = vsel %vm403, %v527, 0
      %v567 = vsel %vm403, %v528, 0
      %v570 = vsel %vm403, %v529, 0
      %v573 = vsel %vm403, %v530, 0
      %v576 = vsel %vm403, %v531, 0
      %v579 = vsel %vm403, %v532, 0
      %581 = vmatpush.msra.mxu0 0.0
      %582 = vmatpush.msra.mxu0 0.0
      %583 = vmatpush.msra.mxu0 0.0
      %584 = vmatpush.msra.mxu0 0.0
      %585 = vmatpush.msra.mxu0 0.0
      %586 = vmatpush.msra.mxu0 0.0
      %587 = vmatpush.msra.mxu0 0.0
      %588 = vmatpush.msra.mxu0 0.0
      %589 = vmatpush.msra.mxu0 0.0
      %590 = vmatpush.msra.mxu0 0.0
      %591 = vmatpush.msra.mxu0 0.0
      %592 = vmatpush.msra.mxu0 0.0
      %593 = vmatpush.msra.mxu0 0.0
      %594 = vmatpush.msra.mxu0 0.0
      %595 = vmatpush.msra.mxu0 %v386
      %596 = vmatpush.msra.mxu0 %v385
      %597 = vmatmul.f32.gmra.mxu0 %v534
      %v598 = vpop.f32.mrf.mxu0
      %v599 = vadd.f32 0.0, %v598
      %600 = vmatmul.f32.gmra.mxu0 %v537
      %v601 = vpop.f32.mrf.mxu0
      %v602 = vadd.f32 0.0, %v601
      %603 = vmatmul.f32.gmra.mxu0 %v540
      %v604 = vpop.f32.mrf.mxu0
      %v605 = vadd.f32 0.0, %v604
      %606 = vmatmul.f32.gmra.mxu0 %v543
      %v607 = vpop.f32.mrf.mxu0
      %v608 = vadd.f32 0.0, %v607
      %609 = vmatmul.f32.gmra.mxu0 %v546
      %v610 = vpop.f32.mrf.mxu0
      %v611 = vadd.f32 0.0, %v610
      %612 = vmatmul.f32.gmra.mxu0 %v549
      %v613 = vpop.f32.mrf.mxu0
      %v614 = vadd.f32 0.0, %v613
      %615 = vmatmul.f32.gmra.mxu0 %v552
      %v616 = vpop.f32.mrf.mxu0
      %v617 = vadd.f32 0.0, %v616
      %618 = vmatmul.f32.gmra.mxu0 %v555
      %v619 = vpop.f32.mrf.mxu0
      %v620 = vadd.f32 0.0, %v619
      %621 = vmatmul.f32.gmra.mxu0 %v558
      %v622 = vpop.f32.mrf.mxu0
      %v623 = vadd.f32 0.0, %v622
      %624 = vmatmul.f32.gmra.mxu0 %v561
      %v625 = vpop.f32.mrf.mxu0
      %v626 = vadd.f32 0.0, %v625
      %627 = vmatmul.f32.gmra.mxu0 %v564
      %v628 = vpop.f32.mrf.mxu0
      %v629 = vadd.f32 0.0, %v628
      %630 = vmatmul.f32.gmra.mxu0 %v567
      %v631 = vpop.f32.mrf.mxu0
      %v632 = vadd.f32 0.0, %v631
      %633 = vmatmul.f32.gmra.mxu0 %v570
      %v634 = vpop.f32.mrf.mxu0
      %v635 = vadd.f32 0.0, %v634
      %636 = vmatmul.f32.gmra.mxu0 %v573
      %v637 = vpop.f32.mrf.mxu0
      %v638 = vadd.f32 0.0, %v637
      %639 = vmatmul.f32.gmra.mxu0 %v576
      %v640 = vpop.f32.mrf.mxu0
      %v641 = vadd.f32 0.0, %v640
      %642 = vmatmul.f32.gmra.mxu0 %v579
      %v643 = vpop.f32.mrf.mxu0
      %v644 = vadd.f32 0.0, %v643
      %645 = vdwg.mxu0
      %v646 = vmul.f32 %v470, %v599
      %v647 = vmul.f32 %v473, %v602
      %v648 = vmul.f32 %v476, %v605
      %v649 = vmul.f32 %v479, %v608
      %v650 = vmul.f32 %v482, %v611
      %v651 = vmul.f32 %v485, %v614
      %v652 = vmul.f32 %v488, %v617
      %v653 = vmul.f32 %v491, %v620
      %v654 = vmul.f32 %v494, %v623
      %v655 = vmul.f32 %v497, %v626
      %v656 = vmul.f32 %v500, %v629
      %v657 = vmul.f32 %v503, %v632
      %v658 = vmul.f32 %v506, %v635
      %v659 = vmul.f32 %v509, %v638
      %v660 = vmul.f32 %v512, %v641
      %v661 = vmul.f32 %v515, %v644
      %v662 = vld [vmem:[%s5] sm:$0xff]
      %v663 = vld [vmem:[%s5 + $0x8] sm:$0xff]
      %v664 = vld [vmem:[%s5 + $0x10] sm:$0xff]
      %v665 = vld [vmem:[%s5 + $0x18] sm:$0xff]
      %v666 = vld [vmem:[%s5 + $0x20] sm:$0xff]
      %v667 = vld [vmem:[%s5 + $0x28] sm:$0xff]
      %v668 = vld [vmem:[%s5 + $0x30] sm:$0xff]
      %v669 = vld [vmem:[%s5 + $0x38] sm:$0xff]
      %v670 = vld [vmem:[%s6] sm:$0xff]
      %v671 = vld [vmem:[%s6 + $0x8] sm:$0xff]
      %v672 = vld [vmem:[%s6 + $0x10] sm:$0xff]
      %v673 = vld [vmem:[%s6 + $0x18] sm:$0xff]
      %v674 = vld [vmem:[%s6 + $0x20] sm:$0xff]
      %v675 = vld [vmem:[%s6 + $0x28] sm:$0xff]
      %v676 = vld [vmem:[%s6 + $0x30] sm:$0xff]
      %v677 = vld [vmem:[%s6 + $0x38] sm:$0xff]
      %679 = vset.pattern.permute.xlu0 0
      %680 = vperm.xlu0 %679, %v670
      %v681 = vpop.permute.xlu0 %680
      %684 = vset.pattern.permute.xlu0 0
      %685 = vperm.xlu0 %684, %v671
      %v686 = vpop.permute.xlu0 %685
      %689 = vset.pattern.permute.xlu0 0
      %690 = vperm.xlu0 %689, %v672
      %v691 = vpop.permute.xlu0 %690
      %694 = vset.pattern.permute.xlu0 0
      %695 = vperm.xlu0 %694, %v673
      %v696 = vpop.permute.xlu0 %695
      %699 = vset.pattern.permute.xlu0 0
      %700 = vperm.xlu0 %699, %v674
      %v701 = vpop.permute.xlu0 %700
      %704 = vset.pattern.permute.xlu0 0
      %705 = vperm.xlu0 %704, %v675
      %v706 = vpop.permute.xlu0 %705
      %709 = vset.pattern.permute.xlu0 0
      %710 = vperm.xlu0 %709, %v676
      %v711 = vpop.permute.xlu0 %710
      %714 = vset.pattern.permute.xlu0 0
      %715 = vperm.xlu0 %714, %v677
      %v716 = vpop.permute.xlu0 %715
      %718 = vmatpush.msra.mxu0 %v661
      %719 = vmatpush.msra.mxu0 %v660
      %720 = vmatpush.msra.mxu0 %v659
      %721 = vmatpush.msra.mxu0 %v658
      %722 = vmatpush.msra.mxu0 %v657
      %723 = vmatpush.msra.mxu0 %v656
      %724 = vmatpush.msra.mxu0 %v655
      %725 = vmatpush.msra.mxu0 %v654
      %726 = vmatpush.msra.mxu0 %v653
      %727 = vmatpush.msra.mxu0 %v652
      %728 = vmatpush.msra.mxu0 %v651
      %729 = vmatpush.msra.mxu0 %v650
      %730 = vmatpush.msra.mxu0 %v649
      %731 = vmatpush.msra.mxu0 %v648
      %732 = vmatpush.msra.mxu0 %v647
      %733 = vmatpush.msra.mxu0 %v646
      %734 = vmatmul.f32.gmra.mxu0 %v662
      %v735 = vpop.f32.mrf.mxu0
      %v736 = vadd.f32 %v681, %v735
      %737 = vmatmul.f32.gmra.mxu0 %v663
      %v738 = vpop.f32.mrf.mxu0
      %v739 = vadd.f32 %v686, %v738
      %740 = vmatmul.f32.gmra.mxu0 %v664
      %v741 = vpop.f32.mrf.mxu0
      %v742 = vadd.f32 %v691, %v741
      %743 = vmatmul.f32.gmra.mxu0 %v665
      %v744 = vpop.f32.mrf.mxu0
      %v745 = vadd.f32 %v696, %v744
      %746 = vmatmul.f32.gmra.mxu0 %v666
      %v747 = vpop.f32.mrf.mxu0
      %v748 = vadd.f32 %v701, %v747
      %749 = vmatmul.f32.gmra.mxu0 %v667
      %v750 = vpop.f32.mrf.mxu0
      %v751 = vadd.f32 %v706, %v750
      %752 = vmatmul.f32.gmra.mxu0 %v668
      %v753 = vpop.f32.mrf.mxu0
      %v754 = vadd.f32 %v711, %v753
      %755 = vmatmul.f32.gmra.mxu0 %v669
      %v756 = vpop.f32.mrf.mxu0
      %v757 = vadd.f32 %v716, %v756
      %758 = vdwg.mxu0
      %v759 = vmax.f32 %v736, 0.0
      %v760 = vmax.f32 %v739, 0.0
      %v761 = vmax.f32 %v742, 0.0
      %v762 = vmax.f32 %v745, 0.0
      %v763 = vmax.f32 %v748, 0.0
      %v764 = vmax.f32 %v751, 0.0
      %v765 = vmax.f32 %v754, 0.0
      %v766 = vmax.f32 %v757, 0.0
      %v767 = vld [vmem:[%s7] sm:$0xff]
      %v768 = vld [vmem:[%s7 + $0x8] sm:$0xff]
      %v769 = vld [vmem:[%s7 + $0x10] sm:$0xff]
      %v770 = vld [vmem:[%s7 + $0x18] sm:$0xff]
      %v771 = vld [vmem:[%s8] sm:$0xff]
      %v772 = vld [vmem:[%s8 + $0x8] sm:$0xff]
      %v773 = vld [vmem:[%s8 + $0x10] sm:$0xff]
      %v774 = vld [vmem:[%s8 + $0x18] sm:$0xff]
      %776 = vset.pattern.permute.xlu0 0
      %777 = vperm.xlu0 %776, %v771
      %v778 = vpop.permute.xlu0 %777
      %781 = vset.pattern.permute.xlu0 0
      %782 = vperm.xlu0 %781, %v772
      %v783 = vpop.permute.xlu0 %782
      %786 = vset.pattern.permute.xlu0 0
      %787 = vperm.xlu0 %786, %v773
      %v788 = vpop.permute.xlu0 %787
      %791 = vset.pattern.permute.xlu0 0
      %792 = vperm.xlu0 %791, %v774
      %v793 = vpop.permute.xlu0 %792
      %vm795 = vcmask 523264
      %v797 = vsel %vm795, %v767, 0
      %v800 = vsel %vm795, %v768, 0
      %v803 = vsel %vm795, %v769, 0
      %v806 = vsel %vm795, %v770, 0
      %808 = vmatpush.msra.mxu0 0.0
      %809 = vmatpush.msra.mxu0 0.0
      %810 = vmatpush.msra.mxu0 0.0
      %811 = vmatpush.msra.mxu0 0.0
      %812 = vmatpush.msra.mxu0 0.0
      %813 = vmatpush.msra.mxu0 0.0
      %814 = vmatpush.msra.mxu0 0.0
      %815 = vmatpush.msra.mxu0 0.0
      %816 = vmatpush.msra.mxu0 %v766
      %817 = vmatpush.msra.mxu0 %v765
      %818 = vmatpush.msra.mxu0 %v764
      %819 = vmatpush.msra.mxu0 %v763
      %820 = vmatpush.msra.mxu0 %v762
      %821 = vmatpush.msra.mxu0 %v761
      %822 = vmatpush.msra.mxu0 %v760
      %823 = vmatpush.msra.mxu0 %v759
      %824 = vmatmul.f32.gmra.mxu0 %v797
      %v825 = vpop.f32.mrf.mxu0
      %v826 = vadd.f32 %v778, %v825
      %827 = vmatmul.f32.gmra.mxu0 %v800
      %v828 = vpop.f32.mrf.mxu0
      %v829 = vadd.f32 %v783, %v828
      %830 = vmatmul.f32.gmra.mxu0 %v803
      %v831 = vpop.f32.mrf.mxu0
      %v832 = vadd.f32 %v788, %v831
      %833 = vmatmul.f32.gmra.mxu0 %v806
      %v834 = vpop.f32.mrf.mxu0
      %v835 = vadd.f32 %v793, %v834
      %836 = vdwg.mxu0
      %v837 = vmax.f32 %v826, 0.0
      %v838 = vmax.f32 %v829, 0.0
      %v839 = vmax.f32 %v832, 0.0
      %v840 = vmax.f32 %v835, 0.0
      %v841 = vld [vmem:[%s9] sm:$0xff]
      %v842 = vld [vmem:[%s9 + $0x8] sm:$0xff]
      %v843 = vld [vmem:[%s9 + $0x10] sm:$0xff]
      %v844 = vld [vmem:[%s9 + $0x18] sm:$0xff]
      %846 = vset.pattern.permute.xlu0 0
      %847 = vperm.xlu0 %846, %v841
      %v848 = vpop.permute.xlu0 %847
      %851 = vset.pattern.permute.xlu0 0
      %852 = vperm.xlu0 %851, %v842
      %v853 = vpop.permute.xlu0 %852
      %856 = vset.pattern.permute.xlu0 0
      %857 = vperm.xlu0 %856, %v843
      %v858 = vpop.permute.xlu0 %857
      %861 = vset.pattern.permute.xlu0 0
      %862 = vperm.xlu0 %861, %v844
      %v863 = vpop.permute.xlu0 %862
      %v865 = vmul.f32 %v837, %v848
      %v866 = vmul.f32 %v838, %v853
      %v867 = vmul.f32 %v839, %v858
      %v868 = vmul.f32 %v840, %v863
      %vm869 = vcmask 654336
      %v870 = vsel %vm869, %v865, 0.0
      %v871 = vsel %vm869, %v866, 0.0
      %v872 = vadd.f32 %v870, %v871
      %v873 = vsel %vm869, %v867, 0.0
      %v874 = vadd.f32 %v872, %v873
      %v875 = vsel %vm869, %v868, 0.0
      %v876 = vadd.f32 %v874, %v875
      %v877 = vrot.slane %v876, 4
      %v878 = vadd.f32 %v876, %v877
      %v879 = vrot.slane %v878, 2
      %v880 = vadd.f32 %v878, %v879
      %v881 = vrot.slane %v880, 1
      %v882 = vadd.f32 %v880, %v881
      %v883 = vld [vmem:[#allocation4] sm:$0x1]
      %885 = vset.pattern.permute.xlu0 0
      %886 = vperm.xlu0 %885, %v883
      %v887 = vpop.permute.xlu0 %886
      %v889 = vperm.slane %v887, 0
      %v890 = vadd.f32 %v882, %v889
      %v891 = vand.u32 2147483647, %v890
      %v892 = vsub.f32 0.0, %v891
      %v893 = vmul.f32 %v892, 1.442695
      %v894 = vpow.pop %v893
      %vm895 = vcmp.ge.f32.partialorder %v890, 0.0
      %v896 = vadd.f32 %v894, 1.0
      %v897 = vrcp.pop %v896
      %v898 = vmul.f32 %v896, %v897
      %v899 = vsub.f32 1.0, %v898
      %v900 = vmul.f32 %v897, %v899
      %v901 = vadd.f32 %v897, %v900
      %vm902 = vweird.f32 %v896
      %vm903 = vweird.f32 %v897
      %vm904 = vmor %vm902, %vm903
      %v905 = vsel %vm904, %v897, %v901
      %v906 = vand.u32 2147483647, %v896
      %vm907 = vcmp.eq.f32.partialorder %v906, 8.507059e+37
      %v908 = vand.u32 %v896, 2147483648
      %v909 = vor.u32 1.1754944e-38, %v908
      %v910 = vsel %vm907, %v909, %v905
      %v911 = vmul.f32 1.0, %v910
      %v912 = vmul.f32 %v894, %v910
      %v913 = vsel %vm895, %v911, %v912
      %v914 = vmul.f32 %v913, 1.442695
      %v915 = vpow.pop %v914
      %917 = vrot.lane.b32.xlu0 %v915, 112
      %v918 = vpop.permute.xlu0 %917
      %v920 = vadd.f32 %v915, %v918
      %921 = vrot.lane.b32.xlu0 %v915, 96
      %v922 = vpop.permute.xlu0 %921
      %v924 = vadd.f32 %v920, %v922
      %925 = vrot.lane.b32.xlu0 %v915, 80
      %v926 = vpop.permute.xlu0 %925
      %v928 = vadd.f32 %v924, %v926
      %929 = vrot.lane.b32.xlu0 %v915, 16
      %v930 = vpop.permute.xlu0 %929
      %v932 = vadd.f32 %v928, %v930
      %v933 = vadd.f32 %v932, 1e-08
      %935 = vrot.lane.b32.xlu0 %v933, 112
      %v936 = vpop.permute.xlu0 %935
      %v938 = vrcp.pop %v936
      %v939 = vmul.f32 %v936, %v938
      %v940 = vsub.f32 1.0, %v939
      %v941 = vmul.f32 %v938, %v940
      %v942 = vadd.f32 %v938, %v941
      %vm943 = vweird.f32 %v936
      %vm944 = vweird.f32 %v938
      %vm945 = vmor %vm943, %vm944
      %v946 = vsel %vm945, %v938, %v942
      %v947 = vand.u32 2147483647, %v936
      %vm948 = vcmp.eq.f32.partialorder %v947, 8.507059e+37
      %v949 = vand.u32 %v936, 2147483648
      %v950 = vor.u32 1.1754944e-38, %v949
      %v951 = vsel %vm948, %v950, %v946
      %v952 = vmul.f32 %v915, %v951
      %v953 = vadd.f32 %v952, 1e-08
      %s954 = smul.u32 %s25, 16
      %v955 = vlaneseq
      %v956 = vand.u32 %v955, 127
      %v957 = vstv %s954
      %v958 = vadd.s32 %v957, %v956
      %s959 = sld [smem:[#allocation3]]
      %v960 = vstv %s959
      %vm961 = vcmp.lt.s32.totalorder %v958, %v960
      %v962 = vsel %vm961, %v953, 0.0
      %vm963 = vcmask 122880
      %v964 = vsel %vm963, %v962, 0.0
      %965 = vadd.xlane.f32.xlu0 %v964
      %v966 = vpop.xlane.xlu0 %965
      %v967 = vrot.slane %v966, 4
      %v968 = vadd.f32 %v966, %v967
      %v969 = vrot.slane %v968, 2
      %v970 = vadd.f32 %v968, %v969
      %v971 = vrot.slane %v970, 1
      %v972 = vadd.f32 %v970, %v971
      %s973 = vtos %v972
      %s974 = ssub.f32 0.0, %s973
      %v975 = vstv %s974
      %vm976 = vcmask 0
      %977 = vst.msk [vmem:[%s367] sm:$0x1] %vm976, %v975
      %p978 = scmp.lt.s32.totalorder %s25, 1
      %s979 = scalar_select %p978, %s25, 1
      %s980 = scalar_lea.vmem %s11, %s979
      // Predicated region
      $region61: #{tpu_custom_call.1} parent=59 // pred_check
        %p981 = pneg %p263
      $region62: #{tpu_custom_call.1} parent=59 // pred_check_branch
        %983 = sbr.rel (%p981) target = $region64
      $region63: #{tpu_custom_call.1} parent=59 // pred_region
        _
      $region64: #{tpu_custom_call.1} parent=59 // pred_fallthru
        _
    $region60: #{tpu_custom_call.1} parent=5 // pred_fallthru
      _
    %p984 = scmp.le.s32.totalorder 2, %s20
    // Predicated region
    $region65: #{tpu_custom_call.1} parent=5 // pred_check
      %p985 = pneg %p984
    $region66: #{tpu_custom_call.1} parent=5 // pred_check_branch
      %987 = sbr.rel (%p985) target = $region68
    $region67: #{tpu_custom_call.1} parent=5 // pred_region
      %s988 = ssub.s32 %s20, 2
      // Predicated region
      $region69: #{tpu_custom_call.1} parent=67 // pred_check
        %p989 = pneg %p269
      $region70: #{tpu_custom_call.1} parent=67 // pred_check_branch
        %991 = sbr.rel (%p989) target = $region72
      $region71: #{tpu_custom_call.1} parent=67 // pred_region
        %p992 = scmp.lt.s32.totalorder %s26, 1
        %s993 = scalar_select %p992, %s26, 1
        %s994 = scalar_lea.vmem %s11, %s993
      $region72: #{tpu_custom_call.1} parent=67 // pred_fallthru
        _
    $region68: #{tpu_custom_call.1} parent=5 // pred_fallthru
      _
  $region6: #{tpu_custom_call.1} parent=0 // loop_footer
    %s24 = sadd.s32 1, %s20
  $region7: #{tpu_custom_call.1} parent=0 // loop_footer_branch
    %19 = sbr.rel target = $region3
  $region8: #{tpu_custom_call.1} parent=0 // loop_exit
    _

</llo_original>
